<compile_context>
chip_gen: v7x
topology: tpu7x:2x2x1
jax: 0.10.0
libtpu: 0.0.40
codegen_flags: <defaults>
</compile_context>

<pallas_src>
import jax
import jax.numpy as jnp
from jax.experimental import pallas as pl
from jax.experimental.pallas import tpu as pltpu

ALPHA = 0.25
GAMMA = 2.0

# TODO(synk): optional per-class `weight` (FocalLoss(weight=...)) is not
# implemented; this kernel computes the module's default weight=None path.
# TODO(synk): for very small C (<=64) a lane-packed layout (k=128//C rows per
# lane group + segmented reductions) would recover 2-4x lane utilization; the
# current kernel keeps the straightforward (rows, C) layout.


def _make_focal_kernel(n_rows, tiles_per_split, tile_n):
    def kernel(logits_ref, targets_ref, out_ref):
        s = pl.program_id(0)   # parallel split (megacore on v7x)
        i = pl.program_id(1)   # row-tile index within the split (reduction axis)

        @pl.when(i == 0)
        def _():
            out_ref[...] = jnp.zeros_like(out_ref)

        x = logits_ref[...].astype(jnp.float32)       # (tile_n, C)
        t = targets_ref[...]                          # (tile_n, 1) int32
        tn, c = x.shape

        # one-hot mask of the target class (2-D iota required on TPU)
        col = jax.lax.broadcasted_iota(jnp.int32, (tn, c), 1)
        onehot = col == t

        # numerically-stable log-softmax pieces (3 width-C reductions total)
        m = jnp.max(x, axis=-1, keepdims=True)                      # (tile_n, 1)
        e = jnp.exp(x - m)                                          # (tile_n, C)
        denom = jnp.sum(e, axis=-1, keepdims=True)                  # (tile_n, 1)
        tgt_logit = jnp.sum(jnp.where(onehot, x, 0.0), axis=-1, keepdims=True)

        ce = jnp.log(denom) - (tgt_logit - m)    # logsumexp - target logit
        pt = jnp.exp(-ce)                        # (tile_n, 1) EUP exp (no p_num path)
        omp = 1.0 - pt
        if GAMMA == 2:                           # gamma=2 -> plain VPU square
            gw = omp * omp
        else:
            gw = omp ** GAMMA
        focal = ALPHA * gw * ce                  # (tile_n, 1)

        # mask rows past N (last partial tile / surplus tiles of this split)
        row0 = (s * tiles_per_split + i) * tile_n
        row = row0 + jax.lax.broadcasted_iota(jnp.int32, (tn, 1), 0)
        partial = jnp.sum(jnp.where(row < n_rows, focal, 0.0))

        out_ref[...] += partial                  # running split partial sum

    return kernel


def _vmem_config():
    """(vmem_limit_bytes, per-step working budget) chosen per TPU generation."""
    try:
        cap = pltpu.get_tpu_info().vmem_capacity_bytes
    except Exception:
        cap = 64 * 1024 * 1024
    if cap >= 100 * 1024 * 1024:
        # v5e / v6e: 128 MiB physical VMEM -> raise the scoped limit, big tiles
        return 64 * 1024 * 1024, 48 * 1024 * 1024
    # v7x-class: 64 MiB physical per TC -> explicit 48 MiB ceiling, headroom kept
    return 48 * 1024 * 1024, 32 * 1024 * 1024


def _choose_tile_n(n, c, itemsize, working_budget_bytes):
    # Per-row VMEM footprint of one grid step:
    #   2x double-buffered logits rows (native dtype)
    #   2x double-buffered targets rows (int32, lane-padded to 128 lanes)
    #   ~4 width-C f32 temporaries (upcast x, exp, selects) live at once
    per_row = 2 * c * itemsize + 2 * 128 * 4 + 4 * c * 4
    t = working_budget_bytes // max(1, per_row)
    t = max(8, (t // 8) * 8)                     # sublane-aligned, no artificial cap
    n_padded = ((n + 7) // 8) * 8
    return min(t, n_padded)


def _default_num_splits():
    # 2 TensorCores per chip only on v7x-class parts; v5e/v6e are single-TC.
    try:
        kind = jax.devices()[0].device_kind.lower()
    except Exception:
        return 1
    return 2 if ("v7" in kind or "7x" in kind) else 1


def focal_loss(inputs, targets, *, tile_n=None, num_splits=None):
    """Mean focal loss. inputs: (N, C) float logits; targets: (N,) int labels."""
    n, c = inputs.shape
    itemsize = jnp.dtype(inputs.dtype).itemsize
    targets2d = targets.astype(jnp.int32).reshape(n, 1)

    vmem_limit, working_budget = _vmem_config()
    if tile_n is None:
        tile_n = _choose_tile_n(n, c, itemsize, working_budget)
    total_tiles = -(-n // tile_n)                    # cdiv

    if num_splits is None:
        num_splits = _default_num_splits()
    num_splits = max(1, min(num_splits, total_tiles))  # never more splits than tiles

    tiles_per_split = -(-total_tiles // num_splits)  # cdiv
    grid = (num_splits, tiles_per_split)

    def row_block(s, i):
        # clamp surplus tiles of the last split back in-bounds; their rows are
        # masked out inside the kernel anyway.
        return (jnp.minimum(s * tiles_per_split + i, total_tiles - 1), 0)

    kernel = _make_focal_kernel(n, tiles_per_split, tile_n)

    cost = pl.CostEstimate(
        flops=10 * n * c,
        transcendentals=n * c + 2 * n,
        bytes_accessed=n * c * itemsize + n * 4 + num_splits * 8 * 128 * 4,
    )

    out = pl.pallas_call(
        kernel,
        # one lane/sublane-aligned (8, 128) f32 partial-sum block per split
        out_shape=jax.ShapeDtypeStruct((num_splits * 8, 128), jnp.float32),
        grid_spec=pltpu.PrefetchScalarGridSpec(
            num_scalar_prefetch=0,
            grid=grid,
            in_specs=[
                pl.BlockSpec((tile_n, c), row_block),   # logits, native dtype
                pl.BlockSpec((tile_n, 1), row_block),   # targets
            ],
            out_specs=pl.BlockSpec((8, 128), lambda s, i: (s, 0)),
        ),
        compiler_params=pltpu.CompilerParams(
            dimension_semantics=("parallel", "arbitrary"),
            vmem_limit_bytes=vmem_limit,
        ),
        cost_estimate=cost,
    )(inputs, targets2d)

    partials = out.reshape(num_splits, 8, 128)[:, 0, 0]
    return jnp.sum(partials) / n


def _focal_loss_ref(inputs, targets):
    # pure-JAX reference (mirrors F.cross_entropy + focal weighting)
    logp = jax.nn.log_softmax(inputs.astype(jnp.float32), axis=-1)
    ce = -jnp.take_along_axis(logp, targets[:, None].astype(jnp.int32), axis=-1)[:, 0]
    pt = jnp.exp(-ce)
    return jnp.mean(ALPHA * (1.0 - pt) ** GAMMA * ce)


if __name__ == "__main__":
    key = jax.random.PRNGKey(0)
    k1, k2 = jax.random.split(key)
    N, C = 24, 32
    inputs = jax.random.normal(k1, (N, C), dtype=jnp.float32)
    targets = jax.random.randint(k2, (N,), 0, C, dtype=jnp.int32)

    ref = jax.block_until_ready(_focal_loss_ref(inputs, targets))

    # default (auto) tile / split count: single tile per split on this chip
    loss = jax.block_until_ready(focal_loss(inputs, targets))
    assert jnp.allclose(loss, ref, atol=1e-5, rtol=1e-5), (loss, ref)

    # forced small tile + 2 splits: exercises multi-tile accumulation,
    # clamped surplus tiles and tail-row masking
    loss_tiled = jax.block_until_ready(
        focal_loss(inputs, targets, tile_n=8, num_splits=2))
    assert jnp.allclose(loss_tiled, ref, atol=1e-5, rtol=1e-5), (loss_tiled, ref)

    print("KERNEL_OK")
</pallas_src>

<mosaic_0001>
module attributes {stable_mosaic.version = 11 : i64} {
  func.func @kernel(%arg0: i32, %arg1: i32, %arg2: memref<24x32xf32, #tpu.memory_space<vmem>>, %arg3: memref<24x1xi32, #tpu.memory_space<vmem>>, %arg4: memref<8x128xf32, #tpu.memory_space<vmem>>) attributes {dimension_semantics = [#tpu.dimension_semantics<parallel>, #tpu.dimension_semantics<arbitrary>], iteration_bounds = array<i64: 1, 1>, scalar_prefetch = 0 : i64, scratch_operands = 0 : i64, tpu.core_type = #tpu.core_type<tc>, window_params = [{transform_indices = @transform_0, window_bounds = array<i64: 24, 32>}, {transform_indices = @transform_1, window_bounds = array<i64: 24, 1>}, {transform_indices = @transform_2, window_bounds = array<i64: 8, 128>}]} {
    %c0_i32 = arith.constant 0 : i32
    %0 = arith.cmpi eq, %arg1, %c0_i32 : i32
    %1 = arith.extui %0 : i1 to i32
    %c0_i32_0 = arith.constant 0 : i32
    %2 = arith.cmpi ne, %1, %c0_i32_0 : i32
    scf.if %2 {
      %cst_17 = arith.constant 0.000000e+00 : f32
      %49 = vector.broadcast %cst_17 : f32 to vector<8x128xf32>
      %c0_18 = arith.constant 0 : index
      %c0_19 = arith.constant 0 : index
      %50 = vector.load %arg4[%c0_18, %c0_19] : memref<8x128xf32, #tpu.memory_space<vmem>>, vector<8x128xf32>
      tpu.vector_store %arg4[%c0_18, %c0_19], %49 {strides = array<i32>} : memref<8x128xf32, #tpu.memory_space<vmem>>, vector<8x128xf32>,
    } else {
    }
    %c0 = arith.constant 0 : index
    %c0_1 = arith.constant 0 : index
    %3 = vector.load %arg2[%c0, %c0_1] : memref<24x32xf32, #tpu.memory_space<vmem>>, vector<24x32xf32>
    %c0_2 = arith.constant 0 : index
    %c0_3 = arith.constant 0 : index
    %4 = vector.load %arg3[%c0_2, %c0_3] : memref<24x1xi32, #tpu.memory_space<vmem>>, vector<24x1xi32>
    %5 = tpu.iota {dimensions = array<i32: 1>} : vector<24x32xi32>
    %6 = vector.broadcast %4 : vector<24x1xi32> to vector<24x32xi32>
    %7 = arith.cmpi eq, %5, %6 : vector<24x32xi32>
    %cst = arith.constant dense<0xFF800000> : vector<24xf32>
    %8 = vector.multi_reduction <maximumf>, %3, %cst [1] : vector<24x32xf32> to vector<24xf32>
    %9 = vector.shape_cast %8 : vector<24xf32> to vector<24x1xf32>
    %10 = vector.broadcast %9 : vector<24x1xf32> to vector<24x32xf32>
    %11 = arith.subf %3, %10 : vector<24x32xf32>
    %12 = math.exp %11 : vector<24x32xf32>
    %cst_4 = arith.constant dense<0.000000e+00> : vector<24xf32>
    %13 = vector.multi_reduction <add>, %12, %cst_4 [1] : vector<24x32xf32> to vector<24xf32>
    %14 = vector.shape_cast %13 : vector<24xf32> to vector<24x1xf32>
    %cst_5 = arith.constant 0.000000e+00 : f32
    %15 = vector.broadcast %cst_5 : f32 to vector<24x32xf32>
    %16 = arith.select %7, %3, %15 : vector<24x32xi1>, vector<24x32xf32>
    %cst_6 = arith.constant dense<0.000000e+00> : vector<24xf32>
    %17 = vector.multi_reduction <add>, %16, %cst_6 [1] : vector<24x32xf32> to vector<24xf32>
    %18 = vector.shape_cast %17 : vector<24xf32> to vector<24x1xf32>
    %19 = math.log %14 : vector<24x1xf32>
    %20 = arith.subf %18, %9 : vector<24x1xf32>
    %21 = arith.subf %19, %20 : vector<24x1xf32>
    %cst_7 = arith.constant 0.000000e+00 : f32
    %22 = vector.broadcast %cst_7 : f32 to vector<24x1xf32>
    %23 = arith.subf %22, %21 : vector<24x1xf32>
    %24 = math.exp %23 : vector<24x1xf32>
    %cst_8 = arith.constant 1.000000e+00 : f32
    %25 = vector.broadcast %cst_8 : f32 to vector<24x1xf32>
    %26 = arith.subf %25, %24 : vector<24x1xf32>
    %27 = arith.mulf %26, %26 : vector<24x1xf32>
    %cst_9 = arith.constant 2.500000e-01 : f32
    %28 = vector.broadcast %cst_9 : f32 to vector<24x1xf32>
    %29 = arith.mulf %28, %27 : vector<24x1xf32>
    %30 = arith.mulf %29, %21 : vector<24x1xf32>
    %c1_i32 = arith.constant 1 : i32
    %31 = arith.muli %arg0, %c1_i32 : i32
    %32 = arith.addi %31, %arg1 : i32
    %c24_i32 = arith.constant 24 : i32
    %33 = arith.muli %32, %c24_i32 : i32
    %34 = tpu.iota {dimensions = array<i32: 0>} : vector<24x1xi32>
    %35 = vector.broadcast %33 : i32 to vector<24x1xi32>
    %36 = arith.addi %35, %34 : vector<24x1xi32>
    %c24_i32_10 = arith.constant 24 : i32
    %37 = vector.broadcast %c24_i32_10 : i32 to vector<24x1xi32>
    %38 = arith.cmpi slt, %36, %37 : vector<24x1xi32>
    %cst_11 = arith.constant 0.000000e+00 : f32
    %39 = vector.broadcast %cst_11 : f32 to vector<24x1xf32>
    %40 = arith.select %38, %30, %39 : vector<24x1xi1>, vector<24x1xf32>
    %41 = vector.shape_cast %40 : vector<24x1xf32> to vector<1x24x1xf32>
    %cst_12 = arith.constant dense<0.000000e+00> : vector<1xf32>
    %42 = vector.multi_reduction <add>, %41, %cst_12 [1, 2] : vector<1x24x1xf32> to vector<1xf32>
    %43 = vector.shape_cast %42 : vector<1xf32> to vector<1x1x1xf32>
    %44 = vector.extract %43[0, 0, 0] : f32 from vector<1x1x1xf32>
    %c0_13 = arith.constant 0 : index
    %c0_14 = arith.constant 0 : index
    %45 = vector.load %arg4[%c0_13, %c0_14] : memref<8x128xf32, #tpu.memory_space<vmem>>, vector<8x128xf32>
    %46 = vector.broadcast %44 : f32 to vector<8x128xf32>
    %47 = arith.addf %45, %46 : vector<8x128xf32>
    %c0_15 = arith.constant 0 : index
    %c0_16 = arith.constant 0 : index
    %48 = vector.load %arg4[%c0_15, %c0_16] : memref<8x128xf32, #tpu.memory_space<vmem>>, vector<8x128xf32>
    tpu.vector_store %arg4[%c0_15, %c0_16], %47 {strides = array<i32>} : memref<8x128xf32, #tpu.memory_space<vmem>>, vector<8x128xf32>,
    return
  }
  func.func @transform_0(%arg0: i32, %arg1: i32) -> (i32, i32) {
    %c1_i32 = arith.constant 1 : i32
    %0 = arith.muli %arg0, %c1_i32 : i32
    %1 = arith.addi %0, %arg1 : i32
    %c0_i32 = arith.constant 0 : i32
    %2 = arith.minsi %1, %c0_i32 : i32
    %c0_i32_0 = arith.constant 0 : i32
    %c0_i32_1 = arith.constant 0 : i32
    return %2, %c0_i32_0 : i32, i32
  }
  func.func @transform_1(%arg0: i32, %arg1: i32) -> (i32, i32) {
    %c1_i32 = arith.constant 1 : i32
    %0 = arith.muli %arg0, %c1_i32 : i32
    %1 = arith.addi %0, %arg1 : i32
    %c0_i32 = arith.constant 0 : i32
    %2 = arith.minsi %1, %c0_i32 : i32
    %c0_i32_0 = arith.constant 0 : i32
    %c0_i32_1 = arith.constant 0 : i32
    return %2, %c0_i32_0 : i32, i32
  }
  func.func @transform_2(%arg0: i32, %arg1: i32) -> (i32, i32) {
    %c0_i32 = arith.constant 0 : i32
    %c0_i32_0 = arith.constant 0 : i32
    return %arg0, %c0_i32 : i32, i32
  }
}

</mosaic_0001>

<llo_original>
// kernel: tpu_custom_call.1
$region0: #{tpu_custom_call.1}
  #allocation0 [shape = 'u32[]', space=smem, size = 0x4, offset = 0x4, fixed_abs, tag = 'smem constant byte address 0x4 - core index']
  #allocation1 [shape = 'u32[144,128]{1,0:T(1,128)}', space=vmem, size = 0x12000, scoped, tag = 'internal scratch']
  %s0 = inlined_call_operand.vmem [shape: f32[24,32], index: 0, kind: input, shape index: {}]
  %s1 = inlined_call_operand.vmem [shape: s32[24,1], index: 1, kind: input, shape index: {}]
  %s2 = inlined_call_operand.hbm [shape: f32[8,128], index: 2, kind: output, shape index: {}]
  %s3 = sld [smem:[#allocation0]]
  $region22: #{tpu_custom_call.1} parent=0
    _
  %s5 = ssub.s32 1, %s3
  %s6 = scalar_select 0, %s5, %s3
  $region1: #{tpu_custom_call.1} parent=0
    #allocation2 [shape = 'u8[4096]{0}', space=vmem, size = 0x1000, scoped, tag = 'output window, operand 0, single buffered']
    #allocation3 [shape = 's32[1]{0}', space=sflag, size = 0x4, scoped, tag = 'scoped memory for tpu_custom_call.1']
    %7 = vsyncpa [#allocation3], 0
    // Predicated region
    $region2: #{tpu_custom_call.1} parent=1 // pred_check
      _
    $region3: #{tpu_custom_call.1} parent=1 // pred_check_branch
      %9 = sbr.rel (0) target = $region5
    $region4: #{tpu_custom_call.1} parent=1 // pred_region
      %s10 = sadd.s32 0, 0
      %p11 = scmp.lt.s32.totalorder %s10, 0
      %s12 = scalar_select %p11, %s10, 0
      %s13 = smul.u32 3, %s12
      %p14 = scmp.lt.s32.totalorder %s13, 2
      %s15 = scalar_select %p14, %s13, 2
      %s16 = smul.addr %s15, 8
      %s17 = scalar_lea.vmem %s0, %s16
      %s18 = sadd.s32 0, 0
      %p19 = scmp.lt.s32.totalorder %s18, 0
      %s20 = scalar_select %p19, %s18, 0
      %s21 = smul.u32 3, %s20
    $region5: #{tpu_custom_call.1} parent=1 // pred_fallthru
      _
    // Predicated region
    $region6: #{tpu_custom_call.1} parent=1 // pred_check
      _
    $region7: #{tpu_custom_call.1} parent=1 // pred_check_branch
      %23 = sbr.rel (0) target = $region9
    $region8: #{tpu_custom_call.1} parent=1 // pred_region
      %s24 = sadd.s32 0, 0
      %p25 = scmp.lt.s32.totalorder %s24, 0
      %s26 = scalar_select %p25, %s24, 0
      %s27 = smul.u32 3, %s26
      %p28 = scmp.lt.s32.totalorder %s27, 2
      %s29 = scalar_select %p28, %s27, 2
      %s30 = smul.addr %s29, 8
      %s31 = scalar_lea.vmem %s1, %s30
      %s32 = sadd.s32 0, 0
      %p33 = scmp.lt.s32.totalorder %s32, 0
      %s34 = scalar_select %p33, %s32, 0
      %s35 = smul.u32 3, %s34
    $region9: #{tpu_custom_call.1} parent=1 // pred_fallthru
      _
    %s36 = sadd.s32 0, 0
    %p37 = scmp.lt.s32.totalorder %s36, 0
    %s38 = scalar_select %p37, %s36, 0
    %s39 = smul.u32 3, %s38
    %p40 = scmp.lt.s32.totalorder %s39, 2
    %s41 = scalar_select %p40, %s39, 2
    %s42 = smul.addr %s41, 8
    %s43 = scalar_lea.vmem %s0, %s42
    %s44 = sadd.s32 0, 0
    %p45 = scmp.lt.s32.totalorder %s44, 0
    %s46 = scalar_select %p45, %s44, 0
    %s47 = smul.u32 3, %s46
    %p48 = scmp.lt.s32.totalorder %s47, 2
    %s49 = scalar_select %p48, %s47, 2
    %s50 = smul.addr %s49, 8
    %s51 = scalar_lea.vmem %s1, %s50
    %s52 = sadd.s32 0, 0
    %p53 = scmp.lt.s32.totalorder %s52, 0
    %s54 = scalar_select %p53, %s52, 0
    %s55 = smul.u32 3, %s54
    %p56 = scmp.lt.s32.totalorder %s55, 2
    %s57 = scalar_select %p56, %s55, 2
    %s58 = smul.addr %s57, 8
    %s59 = scalar_lea.vmem %s0, %s58
    %s60 = sadd.s32 0, 0
    %p61 = scmp.lt.s32.totalorder %s60, 0
    %s62 = scalar_select %p61, %s60, 0
    %s63 = smul.u32 3, %s62
    %s64 = sadd.s32 0, 0
    %p65 = scmp.lt.s32.totalorder %s64, 0
    %s66 = scalar_select %p65, %s64, 0
    %s67 = smul.u32 3, %s66
    %p68 = scmp.lt.s32.totalorder %s67, 2
    %s69 = scalar_select %p68, %s67, 2
    %s70 = smul.addr %s69, 8
    %s71 = scalar_lea.vmem %s1, %s70
    %s72 = sadd.s32 0, 0
    %p73 = scmp.lt.s32.totalorder %s72, 0
    %s74 = scalar_select %p73, %s72, 0
    %s75 = smul.u32 3, %s74
    %p76 = scmp.eq.s32.totalorder 0, 0
    // Predicated region
    $region10: #{tpu_custom_call.1} parent=1 // pred_check
      %p77 = pneg %p76
    $region11: #{tpu_custom_call.1} parent=1 // pred_check_branch
      %79 = sbr.rel (%p77) target = $region13
    $region12: #{tpu_custom_call.1} parent=1 // pred_region
      %80 = vst [vmem:[#allocation2] sm:$0xff] 0.0
    $region13: #{tpu_custom_call.1} parent=1 // pred_fallthru
      _
    %v81 = vld [vmem:[%s59] sm:$0xff]
    %v82 = vld [vmem:[%s59 + $0x8] sm:$0xff]
    %v83 = vld [vmem:[%s59 + $0x10] sm:$0xff]
    %v84 = vld [vmem:[%s71] sm:$0xff]
    %v85 = vld [vmem:[%s71 + $0x8] sm:$0xff]
    %v86 = vld [vmem:[%s71 + $0x10] sm:$0xff]
    %v87 = vlaneseq
    %v88 = vand.u32 %v87, 127
    %89 = vset.pattern.permute.xlu0 0
    %90 = vperm.xlu0 %89, %v84
    %v91 = vpop.permute.xlu0 %90
    %92 = vset.pattern.permute.xlu0 0
    %93 = vperm.xlu0 %92, %v85
    %v94 = vpop.permute.xlu0 %93
    %95 = vset.pattern.permute.xlu0 0
    %96 = vperm.xlu0 %95, %v86
    %v97 = vpop.permute.xlu0 %96
    %vm98 = vcmp.eq.s32.totalorder %v88, %v91
    %vm99 = vcmp.eq.s32.totalorder %v88, %v94
    %vm100 = vcmp.eq.s32.totalorder %v88, %v97
    %vm101 = vcmask 261120
    %v102 = vsel %vm101, %v81, -inf
    %103 = vmax.xlane.f32.xlu0 %v102
    %v104 = vpop.xlane.xlu0 %103
    %v105 = vsel %vm101, %v82, -inf
    %106 = vmax.xlane.f32.xlu0 %v105
    %v107 = vpop.xlane.xlu0 %106
    %v108 = vsel %vm101, %v83, -inf
    %109 = vmax.xlane.f32.xlu0 %v108
    %v110 = vpop.xlane.xlu0 %109
    %v111 = vsub.f32 %v81, %v104
    %v112 = vsub.f32 %v82, %v107
    %v113 = vsub.f32 %v83, %v110
    %v114 = vmul.f32 %v111, 1.442695
    %v115 = vpow.pop %v114
    %v116 = vmul.f32 %v112, 1.442695
    %v117 = vpow.pop %v116
    %v118 = vmul.f32 %v113, 1.442695
    %v119 = vpow.pop %v118
    %v120 = vsel %vm101, %v115, 0.0
    %121 = vadd.xlane.f32.xlu0 %v120
    %v122 = vpop.xlane.xlu0 %121
    %v123 = vsel %vm101, %v117, 0.0
    %124 = vadd.xlane.f32.xlu0 %v123
    %v125 = vpop.xlane.xlu0 %124
    %v126 = vsel %vm101, %v119, 0.0
    %127 = vadd.xlane.f32.xlu0 %v126
    %v128 = vpop.xlane.xlu0 %127
    %v129 = vsel %vm98, %v81, 0.0
    %v130 = vsel %vm99, %v82, 0.0
    %v131 = vsel %vm100, %v83, 0.0
    %v132 = vsel %vm101, %v129, 0.0
    %133 = vadd.xlane.f32.xlu0 %v132
    %v134 = vpop.xlane.xlu0 %133
    %v135 = vsel %vm101, %v130, 0.0
    %136 = vadd.xlane.f32.xlu0 %v135
    %v137 = vpop.xlane.xlu0 %136
    %v138 = vsel %vm101, %v131, 0.0
    %139 = vadd.xlane.f32.xlu0 %v138
    %v140 = vpop.xlane.xlu0 %139
    %v141 = vlog2.pop %v122
    %v142 = vmul.f32 %v141, 0.6931472
    %v143 = vlog2.pop %v125
    %v144 = vmul.f32 %v143, 0.6931472
    %v145 = vlog2.pop %v128
    %v146 = vmul.f32 %v145, 0.6931472
    %v147 = vsub.f32 %v134, %v104
    %v148 = vsub.f32 %v137, %v107
    %v149 = vsub.f32 %v140, %v110
    %v150 = vsub.f32 %v142, %v147
    %v151 = vsub.f32 %v144, %v148
    %v152 = vsub.f32 %v146, %v149
    %v153 = vsub.f32 0.0, %v150
    %v154 = vsub.f32 0.0, %v151
    %v155 = vsub.f32 0.0, %v152
    %v156 = vmul.f32 %v153, 1.442695
    %v157 = vpow.pop %v156
    %v158 = vmul.f32 %v154, 1.442695
    %v159 = vpow.pop %v158
    %v160 = vmul.f32 %v155, 1.442695
    %v161 = vpow.pop %v160
    %v162 = vsub.f32 1.0, %v157
    %v163 = vsub.f32 1.0, %v159
    %v164 = vsub.f32 1.0, %v161
    %v165 = vmul.f32 %v162, %v162
    %v166 = vmul.f32 %v163, %v163
    %v167 = vmul.f32 %v164, %v164
    %v168 = vmul.f32 %v165, 0.25
    %v169 = vmul.f32 %v166, 0.25
    %v170 = vmul.f32 %v167, 0.25
    %v171 = vmul.f32 %v168, %v150
    %v172 = vmul.f32 %v169, %v151
    %v173 = vmul.f32 %v170, %v152
    %s174 = sadd.s32 0, 0
    %s175 = smul.u32 %s174, 24
    %v176 = vlaneseq
    %v177 = vshrl.u32 %v176, 7
    %v178 = vadd.s32 %v177, 8
    %v179 = vadd.s32 %v177, 16
    %v180 = vstv %s175
    %v181 = vadd.s32 %v180, %v177
    %v182 = vadd.s32 %v180, %v178
    %v183 = vadd.s32 %v180, %v179
    %vm184 = vcmp.lt.s32.totalorder %v181, 24
    %vm185 = vcmp.lt.s32.totalorder %v182, 24
    %vm186 = vcmp.lt.s32.totalorder %v183, 24
    %v187 = vsel %vm184, %v171, 0.0
    %v188 = vsel %vm185, %v172, 0.0
    %v189 = vsel %vm186, %v173, 0.0
    %vm190 = vcmask 7168
    %v191 = vsel %vm190, %v187, 0.0
    %v192 = vsel %vm190, %v188, 0.0
    %v193 = vadd.f32 %v191, %v192
    %v194 = vsel %vm190, %v189, 0.0
    %v195 = vadd.f32 %v193, %v194
    %196 = vadd.xlane.f32.xlu0 %v195
    %v197 = vpop.xlane.xlu0 %196
    %v198 = vrot.slane %v197, 4
    %v199 = vadd.f32 %v197, %v198
    %v200 = vrot.slane %v199, 2
    %v201 = vadd.f32 %v199, %v200
    %v202 = vrot.slane %v201, 1
    %v203 = vadd.f32 %v201, %v202
    %s204 = vtos %v203
    %v205 = vld [vmem:[#allocation2] sm:$0xff]
    %v206 = vstv %s204
    %v207 = vadd.f32 %v205, %v206
    %208 = vst [vmem:[#allocation2] sm:$0xff] %v207
    // Predicated region
    $region14: #{tpu_custom_call.1} parent=1 // pred_check
      _
    $region15: #{tpu_custom_call.1} parent=1 // pred_check_branch
      %210 = sbr.rel (0) target = $region17
    $region16: #{tpu_custom_call.1} parent=1 // pred_region
      %s212 = ssub.s32 128, 128
      %213 = vsyncadd [#allocation3], %s212
      %s215 = sshll.u32 [#allocation2], 4
      %s216 = int_to_ptr.vmem [resolvable:$true] %s215
      %218 = dma.vmem_to_hbm [thread:$0]  %s216, 128, %s2, [#allocation3]
    $region17: #{tpu_custom_call.1} parent=1 // pred_fallthru
      _
    // Predicated region
    $region18: #{tpu_custom_call.1} parent=1 // pred_check
      _
    $region19: #{tpu_custom_call.1} parent=1 // pred_check_branch
      %220 = sbr.rel (0) target = $region21
    $region20: #{tpu_custom_call.1} parent=1 // pred_region
      %221 = dma.done [#allocation3], 128
    $region21: #{tpu_custom_call.1} parent=1 // pred_fallthru
      _
    %222 = vsyncpa [#allocation3], 1

</llo_original>
